<compile_context>
chip_gen: v7x
topology: tpu7x:2x2x1
jax: 0.10.0
libtpu: 0.0.40
codegen_flags: <defaults>
</compile_context>

<pallas_src>
import jax
import jax.numpy as jnp
from jax.experimental import pallas as pl
from jax.experimental.pallas import tpu as pltpu

LANE = 128


def _round_up(x, m):
    return ((x + m - 1) // m) * m


def _pad2(a, rows, cols):
    out = jnp.zeros((rows, cols), a.dtype)
    return out.at[: a.shape[0], : a.shape[1]].set(a)


# --------------------------------------------------------------------------
# Kernels
# --------------------------------------------------------------------------

def project_kernel(src_idx_ref, x_ref, w_ref, o_ref):
    """Per-relation feature projection XW (hoisted out of the dst-tile loop).

    x_ref: (1, tm, Fin_p)   source-type features for relation r (row tile i)
    w_ref: (1, Fin_p, Fout_p)
    o_ref: (1, tm, Fout_p)
    """
    del src_idx_ref  # only used by the index maps
    o_ref[0] = jnp.dot(
        x_ref[0], w_ref[0], preferred_element_type=jnp.float32
    ).astype(o_ref.dtype)


def aggregate_kernel(dst_idx_ref, first_ref, last_ref,
                     a_ref, xw_ref, bsum_ref, o_ref, acc_ref):
    """Accumulate A_hat[r] @ XW[r] over relations of one dst type, then
    add the pre-summed bias and ReLU in the epilogue.

    a_ref:    (1, tm, Ns_p)      normalized adjacency row tile for relation r
    xw_ref:   (1, Ns_p, Fout_p)  projected source features for relation r
    bsum_ref: (1, 1, Fout_p)     sum of biases of relations into this dst type
    o_ref:    (1, tm, Fout_p)    output tile (dst_type, row tile)
    acc_ref:  (tm, Fout_p) f32   VMEM accumulator
    """
    del dst_idx_ref  # only used by the index maps
    r = pl.program_id(1)

    @pl.when(first_ref[r] == 1)
    def _():
        acc_ref[...] = jnp.zeros_like(acc_ref)

    acc_ref[...] += jnp.dot(
        a_ref[0], xw_ref[0], preferred_element_type=jnp.float32
    )

    @pl.when(last_ref[r] == 1)
    def _():
        o_ref[0] = jnp.maximum(acc_ref[...] + bsum_ref[0], 0.0).astype(o_ref.dtype)


# --------------------------------------------------------------------------
# Per-layer driver (two pallas_calls: projection + aggregation)
# --------------------------------------------------------------------------

def hetero_layer(graph, x_all, src_idx, w_stack, bias_sum, out_dtype, tm):
    """relu( sum_r A_hat[r] @ (X[src(r)] @ W[r]) + sum_r b[r] ), all dst types."""
    a_stack = graph["a_stack"]
    R, n_pad, _ = a_stack.shape
    fin_p = x_all.shape[2]
    fout_p = w_stack.shape[2]
    t_dst = bias_sum.shape[0]
    nb = n_pad // tm
    compute_dtype = x_all.dtype

    # 1) XW per relation (lane-dense, computed once; not per destination tile).
    xw = pl.pallas_call(
        project_kernel,
        out_shape=jax.ShapeDtypeStruct((R, n_pad, fout_p), compute_dtype),
        grid_spec=pltpu.PrefetchScalarGridSpec(
            num_scalar_prefetch=1,
            grid=(nb, R),
            in_specs=[
                pl.BlockSpec((1, tm, fin_p), lambda i, r, s: (s[r], i, 0)),
                pl.BlockSpec((1, fin_p, fout_p), lambda i, r, s: (r, 0, 0)),
            ],
            out_specs=pl.BlockSpec((1, tm, fout_p), lambda i, r, s: (r, i, 0)),
        ),
        compiler_params=pltpu.CompilerParams(
            dimension_semantics=("parallel", "arbitrary")
        ),
    )(src_idx, x_all, w_stack)

    # 2) Sum A_hat[r] @ XW[r] over the relations of each dst type; bias + ReLU
    #    once in the epilogue; f32 accumulator scratch, cast at final store.
    h = pl.pallas_call(
        aggregate_kernel,
        out_shape=jax.ShapeDtypeStruct((t_dst, n_pad, fout_p), out_dtype),
        grid_spec=pltpu.PrefetchScalarGridSpec(
            num_scalar_prefetch=3,
            grid=(nb, R),
            in_specs=[
                pl.BlockSpec((1, tm, n_pad), lambda i, r, d, f, l: (r, i, 0)),
                pl.BlockSpec((1, n_pad, fout_p), lambda i, r, d, f, l: (r, 0, 0)),
                pl.BlockSpec((1, 1, fout_p), lambda i, r, d, f, l: (d[r], 0, 0)),
            ],
            out_specs=pl.BlockSpec(
                (1, tm, fout_p), lambda i, r, d, f, l: (d[r], i, 0)
            ),
            scratch_shapes=[pltpu.VMEM((tm, fout_p), jnp.float32)],
        ),
        compiler_params=pltpu.CompilerParams(
            dimension_semantics=("parallel", "arbitrary")  # (dst row tiles, rel sum)
        ),
    )(graph["dst_idx"], graph["is_first"], graph["is_last"], a_stack, xw, bias_sum)
    return h


# --------------------------------------------------------------------------
# Graph preprocessing (static per graph; shared by both layers)
# --------------------------------------------------------------------------

def normalize_adj(adj):
    """DGL GraphConv norm='both':  A_hat[v,u] = A[v,u]/sqrt(in(v)*out(u))."""
    adj = adj.astype(jnp.float32)
    in_deg = jnp.clip(adj.sum(axis=1), 1.0, None)    # per dst node v
    out_deg = jnp.clip(adj.sum(axis=0), 1.0, None)   # per src node u
    return adj * (in_deg[:, None] ** -0.5) * (out_deg[None, :] ** -0.5)


def prepare_graph(adj_hat, rel_specs, ntypes, n_pad, compute_dtype):
    """Sort relations by dst type, pad+stack adjacency once, build SMEM tables."""
    dst_types = [t for t in ntypes if any(d == t for (_, _, d) in rel_specs)]
    dst_pos = {t: i for i, t in enumerate(dst_types)}
    order = [i for t in dst_types
             for i, (_, _, d) in enumerate(rel_specs) if d == t]

    a_stack = jnp.stack(
        [_pad2(adj_hat[i], n_pad, n_pad) for i in order]
    ).astype(compute_dtype)

    src_names = [rel_specs[i][0] for i in order]
    d_list = [dst_pos[rel_specs[i][2]] for i in order]
    n_rel = len(order)
    dst_idx = jnp.asarray(d_list, jnp.int32)
    is_first = jnp.asarray(
        [1 if (k == 0 or d_list[k] != d_list[k - 1]) else 0 for k in range(n_rel)],
        jnp.int32)
    is_last = jnp.asarray(
        [1 if (k == n_rel - 1 or d_list[k] != d_list[k + 1]) else 0
         for k in range(n_rel)],
        jnp.int32)

    return dict(order=order, dst_types=dst_types, src_names=src_names,
                a_stack=a_stack, dst_idx=dst_idx,
                is_first=is_first, is_last=is_last)


# --------------------------------------------------------------------------
# Full forward (two HeteroGraphConv layers, aggregate='sum', ReLU after each)
# --------------------------------------------------------------------------

def gnn_forward(adj_hat, feats, params, rel_specs, ntypes,
                compute_dtype=jnp.bfloat16):
    in_feats = next(iter(feats.values())).shape[1]
    hid_feats = params["conv1"][0]["w"].shape[1]
    out_feats = params["conv2"][0]["w"].shape[1]

    n_sizes = {t: feats[t].shape[0] for t in ntypes}
    n_pad = _round_up(max(n_sizes.values()), LANE)
    fin_p = _round_up(in_feats, LANE)
    fhid_p = _round_up(hid_feats, LANE)
    fout_p = _round_up(out_feats, LANE)

    # Destination-row tile; keep VMEM modest (A tile is tm x n_pad, double-buffered).
    tm = max(t for t in (512, 256, 128) if n_pad % t == 0)

    graph = prepare_graph(adj_hat, rel_specs, ntypes, n_pad, compute_dtype)
    order, dst_types = graph["order"], graph["dst_types"]

    def stack_params(layer, fi_p, fo_p):
        w = jnp.stack(
            [_pad2(params[layer][i]["w"], fi_p, fo_p) for i in order]
        ).astype(compute_dtype)
        bsum = []
        for t in dst_types:
            b = jnp.zeros((fo_p,), jnp.float32)
            for i, (_, _, d) in enumerate(rel_specs):
                if d == t:
                    bi = params[layer][i]["b"]
                    b = b.at[: bi.shape[0]].add(bi)
            bsum.append(b[None, :])
        return w, jnp.stack(bsum)  # (R, fi_p, fo_p), (T_dst, 1, fo_p)

    # Layer 1: inputs stacked per node type (ntypes order), lane-dense padded.
    type_pos = {t: i for i, t in enumerate(ntypes)}
    x0 = jnp.stack(
        [_pad2(feats[t], n_pad, fin_p) for t in ntypes]
    ).astype(compute_dtype)
    src_idx1 = jnp.asarray([type_pos[s] for s in graph["src_names"]], jnp.int32)
    w1, b1 = stack_params("conv1", fin_p, fhid_p)
    h1 = hetero_layer(graph, x0, src_idx1, w1, b1, compute_dtype, tm)

    # Layer 2: hidden activations (one slab per active dst type) feed directly
    # as the source features; no restacking / HBM copy of h1 is needed.
    dst_pos = {t: i for i, t in enumerate(dst_types)}
    for s in graph["src_names"]:
        # TODO(synk): DGL skips relations whose src type has no features; here we
        # require every source type to have received a layer-1 output.
        assert s in dst_pos, f"source type {s} has no layer-1 features"
    src_idx2 = jnp.asarray([dst_pos[s] for s in graph["src_names"]], jnp.int32)
    w2, b2 = stack_params("conv2", fhid_p, fout_p)
    h2 = hetero_layer(graph, h1, src_idx2, w2, b2, jnp.float32, tm)

    return {t: h2[i, : n_sizes[t], :out_feats] for i, t in enumerate(dst_types)}


def gnn_forward_ref(adj_hat, feats, params, rel_specs, ntypes):
    """Pure-JAX f32 reference of the same math, for verification."""
    h = feats
    for layer in ("conv1", "conv2"):
        new_h = {}
        for dst_t in ntypes:
            acc = None
            for i, (s, _, d) in enumerate(rel_specs):
                if d != dst_t:
                    continue
                y = adj_hat[i] @ (h[s] @ params[layer][i]["w"]) + params[layer][i]["b"]
                acc = y if acc is None else acc + y
            if acc is not None:
                new_h[dst_t] = jnp.maximum(acc, 0.0)
        h = new_h
    return h


def glorot(key, fan_in, fan_out):
    lim = (6.0 / (fan_in + fan_out)) ** 0.5
    return jax.random.uniform(key, (fan_in, fan_out), jnp.float32, -lim, lim)


if __name__ == "__main__":
    key = jax.random.PRNGKey(0)

    # Synthetic heterograph: 2 node types, 3 relations.
    ntypes = ["user", "item"]
    rel_specs = [
        ("user", "follows", "user"),
        ("user", "likes", "item"),
        ("item", "liked-by", "user"),
    ]
    N = 16                      # nodes per type
    in_feats, hid_feats, out_feats = 8, 16, 8

    keys = jax.random.split(key, 20)

    # Random dense adjacencies per relation, A[v, u] = 1 if edge u -> v.
    adj_hat = []
    for i, _ in enumerate(rel_specs):
        a = jax.random.bernoulli(keys[i], 0.3, (N, N))
        adj_hat.append(normalize_adj(a))

    # Input node features per type.
    feats = {
        "user": jax.random.normal(keys[4], (N, in_feats), jnp.float32),
        "item": jax.random.normal(keys[5], (N, in_feats), jnp.float32),
    }

    # Per-relation GraphConv parameters (glorot weights, small nonzero biases).
    params = {"conv1": [], "conv2": []}
    for i in range(len(rel_specs)):
        params["conv1"].append({
            "w": glorot(keys[6 + i], in_feats, hid_feats),
            "b": 0.1 * jax.random.normal(keys[10 + i], (hid_feats,), jnp.float32),
        })
        params["conv2"].append({
            "w": glorot(keys[13 + i], hid_feats, out_feats),
            "b": 0.1 * jax.random.normal(keys[16 + i], (out_feats,), jnp.float32),
        })

    ref = gnn_forward_ref(adj_hat, feats, params, rel_specs, ntypes)

    # f32 compute path: tight check against the pure-JAX reference.
    out_f32 = gnn_forward(adj_hat, feats, params, rel_specs, ntypes,
                          compute_dtype=jnp.float32)
    out_f32 = {k: jax.block_until_ready(v) for k, v in out_f32.items()}

    # bf16 operands (MXU-friendly), f32 accumulation: loose check.
    out_bf16 = gnn_forward(adj_hat, feats, params, rel_specs, ntypes,
                           compute_dtype=jnp.bfloat16)
    out_bf16 = {k: jax.block_until_ready(v) for k, v in out_bf16.items()}

    for k in ref:
        assert out_f32[k].shape == (N, out_feats), out_f32[k].shape
        assert jnp.allclose(out_f32[k], ref[k], atol=2e-3, rtol=2e-3), k
        assert jnp.allclose(out_bf16[k].astype(jnp.float32), ref[k],
                            atol=5e-2, rtol=5e-2), k

    print("KERNEL_OK")
</pallas_src>

<mosaic_0001>
module attributes {stable_mosaic.version = 11 : i64} {
  func.func @project_kernel(%arg0: i32, %arg1: i32, %arg2: memref<3xi32, #tpu.memory_space<smem>>, %arg3: memref<1x128x128xf32, #tpu.memory_space<vmem>>, %arg4: memref<1x128x128xf32, #tpu.memory_space<vmem>>, %arg5: memref<1x128x128xf32, #tpu.memory_space<vmem>>) attributes {dimension_semantics = [#tpu.dimension_semantics<parallel>, #tpu.dimension_semantics<arbitrary>], iteration_bounds = array<i64: 1, 3>, scalar_prefetch = 1 : i64, scratch_operands = 0 : i64, tpu.core_type = #tpu.core_type<tc>, window_params = [{transform_indices = @transform_0, window_bounds = array<i64: 1, 128, 128>}, {transform_indices = @transform_1, window_bounds = array<i64: 1, 128, 128>}, {transform_indices = @transform_2, window_bounds = array<i64: 1, 128, 128>}]} {
    %c0 = arith.constant 0 : index
    %c0_0 = arith.constant 0 : index
    %c0_1 = arith.constant 0 : index
    %0 = vector.load %arg3[%c0, %c0_0, %c0_1] : memref<1x128x128xf32, #tpu.memory_space<vmem>>, vector<1x128x128xf32>
    %1 = vector.shape_cast %0 : vector<1x128x128xf32> to vector<128x128xf32>
    %c0_2 = arith.constant 0 : index
    %c0_3 = arith.constant 0 : index
    %c0_4 = arith.constant 0 : index
    %2 = vector.load %arg4[%c0_2, %c0_3, %c0_4] : memref<1x128x128xf32, #tpu.memory_space<vmem>>, vector<1x128x128xf32>
    %3 = vector.shape_cast %2 : vector<1x128x128xf32> to vector<128x128xf32>
    %cst = arith.constant dense<0.000000e+00> : vector<128x128xf32>
    %4 = tpu.matmul %1, %3, %cst {dimension_numbers = #tpu.dot_dimension_numbers<[1], [0], [0], [1], [0, 0, 1, 1], [], []>} : vector<128x128xf32>, vector<128x128xf32>, vector<128x128xf32> -> vector<128x128xf32>
    %c0_5 = arith.constant 0 : index
    %c0_6 = arith.constant 0 : index
    %c0_7 = arith.constant 0 : index
    %5 = vector.load %arg5[%c0_5, %c0_6, %c0_7] : memref<1x128x128xf32, #tpu.memory_space<vmem>>, vector<1x128x128xf32>
    %6 = vector.shape_cast %5 : vector<1x128x128xf32> to vector<128x128xf32>
    %7 = vector.shape_cast %4 : vector<128x128xf32> to vector<1x128x128xf32>
    tpu.vector_store %arg5[%c0_5, %c0_6, %c0_7], %7 {strides = array<i32>} : memref<1x128x128xf32, #tpu.memory_space<vmem>>, vector<1x128x128xf32>,
    return
  }
  func.func @transform_0(%arg0: i32, %arg1: i32, %arg2: memref<3xi32, #tpu.memory_space<smem>>) -> (i32, i32, i32) {
    %0 = arith.index_cast %arg1 : i32 to index
    %1 = memref.load %arg2[%0] : memref<3xi32, #tpu.memory_space<smem>>
    %c0_i32 = arith.constant 0 : i32
    %c0_i32_0 = arith.constant 0 : i32
    return %1, %arg0, %c0_i32 : i32, i32, i32
  }
  func.func @transform_1(%arg0: i32, %arg1: i32, %arg2: memref<3xi32, #tpu.memory_space<smem>>) -> (i32, i32, i32) {
    %c0_i32 = arith.constant 0 : i32
    %c0_i32_0 = arith.constant 0 : i32
    %c0_i32_1 = arith.constant 0 : i32
    return %arg1, %c0_i32, %c0_i32_0 : i32, i32, i32
  }
  func.func @transform_2(%arg0: i32, %arg1: i32, %arg2: memref<3xi32, #tpu.memory_space<smem>>) -> (i32, i32, i32) {
    %c0_i32 = arith.constant 0 : i32
    %c0_i32_0 = arith.constant 0 : i32
    return %arg1, %arg0, %c0_i32 : i32, i32, i32
  }
}

</mosaic_0001>

<llo_original>
// kernel: tpu_custom_call.1
$region0: #{tpu_custom_call.1}
  #allocation0 [shape = 'u32[]', space=smem, size = 0x4, offset = 0x4, fixed_abs, tag = 'smem constant byte address 0x4 - core index']
  #allocation1 [shape = 'u32[144,128]{1,0:T(1,128)}', space=vmem, size = 0x12000, scoped, tag = 'internal scratch']
  #allocation2 [shape = 's32[1]{0}', space=sflag, size = 0x4, scoped, tag = 'scoped memory for tpu_custom_call.1']
  #allocation3 [shape = 'u8[512]{0}', space=smem, size = 0x200, scoped, tag = 'prefetched SMEM operand 0']
  %s0 = inlined_call_operand.hbm [shape: s32[3], index: 0, kind: input, shape index: {}]
  %s1 = inlined_call_operand.hbm [shape: f32[2,128,128], index: 1, kind: input, shape index: {}]
  %s2 = inlined_call_operand.hbm [shape: f32[3,128,128], index: 2, kind: input, shape index: {}]
  %s3 = inlined_call_operand.hbm [shape: f32[3,128,128], index: 3, kind: output, shape index: {}]
  %s4 = sld [smem:[#allocation0]]
  $region49: #{tpu_custom_call.1} parent=0
    _
  %s6 = ssub.s32 1, %s4
  %s7 = scalar_select 0, %s6, %s4
  %9 = dma.hbm_to_smem %s0, 16, [#allocation3], [#allocation2]
  %10 = dma.done [#allocation2], 16
  %11 = sfence
  $region1: #{tpu_custom_call.1} parent=0
    #allocation4 [shape = 'u8[131072]{0}', space=vmem, size = 0x20000, scoped, tag = 'input window, operand 1']
    #allocation5 [shape = 's32[2]{0}', space=sflag, size = 0x8, scoped, tag = 'scoped memory for tpu_custom_call.1']
    #allocation6 [shape = 's32[2]{0}', space=sflag, size = 0x8, scoped, tag = 'scoped memory for tpu_custom_call.1']
    #allocation7 [shape = 'u8[131072]{0}', space=vmem, size = 0x20000, scoped, tag = 'input window, operand 2']
    #allocation8 [shape = 's32[2]{0}', space=sflag, size = 0x8, scoped, tag = 'scoped memory for tpu_custom_call.1']
    #allocation9 [shape = 'u8[131072]{0}', space=vmem, size = 0x20000, scoped, tag = 'output window, operand 0']
    %12 = vsyncpa [#allocation5], 0
    %s13 = scalar_lea.sflag [#allocation5], 1
    %14 = vsyncpa %s13, 0
    %15 = vsyncpa [#allocation8], 0
    %s16 = scalar_lea.sflag [#allocation8], 1
    %17 = vsyncpa %s16, 0
    %18 = vsyncpa [#allocation6], 0
    %s19 = scalar_lea.sflag [#allocation6], 1
    %20 = vsyncpa %s19, 0
    loop: start=0, step=1, limit=5
    $region2: #{tpu_custom_call.1} parent=1 // loop_pre_header
      _
    $region3: #{tpu_custom_call.1} parent=1 // loop_header
      %s22 = sphi 0, %s26
      %p23 = scmp.ge.s32.totalorder %s22, 5
      %s29 = sphi 0, %s41
      %s30 = sphi 0, %s37
      %s31 = sphi 0, %s29
      %s32 = sphi 0, %s30
      %s33 = sphi 0, %s31
      %s34 = sphi 0, %s32
      %s48 = sphi 0, %s50
      %s51 = sphi 0, %s48
      %s52 = sphi 0, %s51
      %s68 = sphi 0, %s52
      %s74 = sphi 0, %s76
      %s77 = sphi 0, %s74
      %s78 = sphi 0, %s77
      %s94 = sphi 0, %s78
      %s102 = sphi 0, %s104
      %s105 = sphi 0, %s102
      %s106 = sphi 0, %s105
      %s122 = sphi 0, %s106
    $region4: #{tpu_custom_call.1} parent=1 // loop_header_branch
      %25 = sbr.rel (%p23) target = $region8
    $region5: #{tpu_custom_call.1} parent=1 // loop_body
      %s27 = ssub.s32 %s22, 1
      %s28 = ssub.s32 %s22, 2
      %s35 = sadd.s32 1, %s30
      %p36 = scmp.ge.s32.totalorder %s35, 3
      %s37 = scalar_select %p36, 0, %s35
      %s38 = sadd.s32 1, %s29
      %s39 = scalar_select %p36, %s38, %s29
      %p40 = scmp.ge.s32.totalorder %s39, 1
      %s41 = scalar_select %p40, 0, %s39
      %s42 = sld [smem:[#allocation3 + %s30]]
      %s43 = sld [smem:[#allocation3 + %s37]]
      %s44 = ssub.s32 %s42, %s43
      %s45 = ssub.s32 %s29, %s41
      %s46 = sor.u32 %s44, %s45
      %p47 = scmp.eq.s32.totalorder %s46, 0
      %s49 = sadd.s32 %s48, 1
      %s50 = scalar_select %p47, %s48, %s49
      %p53 = pneg %p47
      %p54 = scmp.eq.s32.totalorder %s22, 2
      %p55 = por %p53, %p54
      %p56 = scmp.ne.s32.totalorder %s48, %s51
      %p57 = scmp.eq.s32.totalorder %s22, 0
      %p58 = por %p56, %p57
      %p59 = scmp.ne.s32.totalorder %s48, %s51
      %p60 = scmp.eq.s32.totalorder %s27, 2
      %p61 = por %p59, %p60
      %p62 = scmp.ne.s32.totalorder %s51, %s52
      %p63 = scmp.eq.s32.totalorder %s27, 0
      %p64 = por %p62, %p63
      %p65 = scmp.ne.s32.totalorder %s51, %s52
      %p66 = scmp.eq.s32.totalorder %s28, 2
      %p67 = por %p65, %p66
      %p69 = scmp.ne.s32.totalorder %s52, %s68
      %p70 = scmp.eq.s32.totalorder %s28, 0
      %p71 = por %p69, %p70
      %s72 = ssub.s32 %s30, %s37
      %p73 = scmp.eq.s32.totalorder %s72, 0
      %s75 = sadd.s32 %s74, 1
      %s76 = scalar_select %p73, %s74, %s75
      %p79 = pneg %p73
      %p80 = scmp.eq.s32.totalorder %s22, 2
      %p81 = por %p79, %p80
      %p82 = scmp.ne.s32.totalorder %s74, %s77
      %p83 = scmp.eq.s32.totalorder %s22, 0
      %p84 = por %p82, %p83
      %p85 = scmp.ne.s32.totalorder %s74, %s77
      %p86 = scmp.eq.s32.totalorder %s27, 2
      %p87 = por %p85, %p86
      %p88 = scmp.ne.s32.totalorder %s77, %s78
      %p89 = scmp.eq.s32.totalorder %s27, 0
      %p90 = por %p88, %p89
      %p91 = scmp.ne.s32.totalorder %s77, %s78
      %p92 = scmp.eq.s32.totalorder %s28, 2
      %p93 = por %p91, %p92
      %p95 = scmp.ne.s32.totalorder %s78, %s94
      %p96 = scmp.eq.s32.totalorder %s28, 0
      %p97 = por %p95, %p96
      %s98 = ssub.s32 %s30, %s37
      %s99 = ssub.s32 %s29, %s41
      %s100 = sor.u32 %s98, %s99
      %p101 = scmp.eq.s32.totalorder %s100, 0
      %s103 = sadd.s32 %s102, 1
      %s104 = scalar_select %p101, %s102, %s103
      %p107 = pneg %p101
      %p108 = scmp.eq.s32.totalorder %s22, 2
      %p109 = por %p107, %p108
      %p110 = scmp.ne.s32.totalorder %s102, %s105
      %p111 = scmp.eq.s32.totalorder %s22, 0
      %p112 = por %p110, %p111
      %p113 = scmp.ne.s32.totalorder %s102, %s105
      %p114 = scmp.eq.s32.totalorder %s27, 2
      %p115 = por %p113, %p114
      %p116 = scmp.ne.s32.totalorder %s105, %s106
      %p117 = scmp.eq.s32.totalorder %s27, 0
      %p118 = por %p116, %p117
      %p119 = scmp.ne.s32.totalorder %s105, %s106
      %p120 = scmp.eq.s32.totalorder %s28, 2
      %p121 = por %p119, %p120
      %p123 = scmp.ne.s32.totalorder %s106, %s122
      %p124 = scmp.eq.s32.totalorder %s28, 0
      %p125 = por %p123, %p124
      %p126 = scmp.le.s32.totalorder 1, %s22
      %p127 = scmp.lt.s32.totalorder %s22, 4
      %p128 = pnand %p126, %p127
      %p129 = pneg %p128
      // Predicated region
      $region9: #{tpu_custom_call.1} parent=5 // pred_check
        _
      $region10: #{tpu_custom_call.1} parent=5 // pred_check_branch
        %131 = sbr.rel (%p128) target = $region12
      $region11: #{tpu_custom_call.1} parent=5 // pred_region
        %s132 = ssub.s32 %s22, 1
      $region12: #{tpu_custom_call.1} parent=5 // pred_fallthru
        _
      %p133 = scmp.lt.s32.totalorder %s22, 3
      // Predicated region
      $region13: #{tpu_custom_call.1} parent=5 // pred_check
        %p134 = pneg %p133
      $region14: #{tpu_custom_call.1} parent=5 // pred_check_branch
        %136 = sbr.rel (%p134) target = $region16
      $region15: #{tpu_custom_call.1} parent=5 // pred_region
        // Predicated region
        $region17: #{tpu_custom_call.1} parent=15 // pred_check
          %p137 = pneg %p58
        $region18: #{tpu_custom_call.1} parent=15 // pred_check_branch
          %139 = sbr.rel (%p137) target = $region20
        $region19: #{tpu_custom_call.1} parent=15 // pred_region
          %s140 = sand.u32 %s48, 1
          %s141 = scalar_lea.sflag [#allocation5], %s140
          %s142 = sand.u32 %s48, 1
          %s143 = smul.addr %s142, 128
          %s144 = scalar_lea.vmem [#allocation4], %s143
          %s145 = sld [smem:[#allocation3 + %s30]]
          %s146 = smul.u32 16, %s29
          %s148 = ssub.s32 2048, 2048
          %149 = vsyncadd %s141, %s148
          %s150 = smul.addr %s145, 16
          %s151 = sadd.s32 %s146, %s150
          %s152 = smul.addr %s151, 128
          %s153 = scalar_lea.hbm %s1, %s152
          %s154 = sshll.u32 %s144, 4
          %s155 = int_to_ptr.vmem [resolvable:$true] %s154
          %160 = dma.hbm_to_vmem [thread:$0]  %s153, 2048, %s155, %s141, 128, 128, 8
        $region20: #{tpu_custom_call.1} parent=15 // pred_fallthru
          _
        // Predicated region
        $region21: #{tpu_custom_call.1} parent=15 // pred_check
          %p161 = pneg %p84
        $region22: #{tpu_custom_call.1} parent=15 // pred_check_branch
          %163 = sbr.rel (%p161) target = $region24
        $region23: #{tpu_custom_call.1} parent=15 // pred_region
          %s164 = sand.u32 %s74, 1
          %s165 = scalar_lea.sflag [#allocation8], %s164
          %s166 = sand.u32 %s74, 1
          %s167 = smul.addr %s166, 128
          %s168 = scalar_lea.vmem [#allocation7], %s167
          %s170 = ssub.s32 2048, 2048
          %171 = vsyncadd %s165, %s170
          %s172 = smul.addr %s30, 16
          %s173 = smul.addr %s172, 128
          %s174 = scalar_lea.hbm %s2, %s173
          %s175 = sshll.u32 %s168, 4
          %s176 = int_to_ptr.vmem [resolvable:$true] %s175
          %181 = dma.hbm_to_vmem [thread:$0]  %s174, 2048, %s176, %s165, 128, 128, 8
        $region24: #{tpu_custom_call.1} parent=15 // pred_fallthru
          _
      $region16: #{tpu_custom_call.1} parent=5 // pred_fallthru
        _
      %p182 = scmp.le.s32.totalorder 1, %s22
      %p183 = scmp.lt.s32.totalorder %s22, 4
      %p184 = pnand %p182, %p183
      %p185 = pneg %p184
      // Predicated region
      $region25: #{tpu_custom_call.1} parent=5 // pred_check
        _
      $region26: #{tpu_custom_call.1} parent=5 // pred_check_branch
        %187 = sbr.rel (%p184) target = $region28
      $region27: #{tpu_custom_call.1} parent=5 // pred_region
        %s188 = ssub.s32 %s22, 1
        %s189 = sand.u32 %s51, 1
        %s190 = scalar_lea.sflag [#allocation5], %s189
        %s191 = sand.u32 %s51, 1
        %s192 = smul.addr %s191, 128
        %s193 = scalar_lea.vmem [#allocation4], %s192
        // Predicated region
        $region29: #{tpu_custom_call.1} parent=27 // pred_check
          %p194 = pneg %p64
        $region30: #{tpu_custom_call.1} parent=27 // pred_check_branch
          %196 = sbr.rel (%p194) target = $region32
        $region31: #{tpu_custom_call.1} parent=27 // pred_region
          %197 = dma.done %s190, 2048
        $region32: #{tpu_custom_call.1} parent=27 // pred_fallthru
          _
        %s198 = sand.u32 %s77, 1
        %s199 = scalar_lea.sflag [#allocation8], %s198
        %s200 = sand.u32 %s77, 1
        %s201 = smul.addr %s200, 128
        %s202 = scalar_lea.vmem [#allocation7], %s201
        // Predicated region
        $region33: #{tpu_custom_call.1} parent=27 // pred_check
          %p203 = pneg %p90
        $region34: #{tpu_custom_call.1} parent=27 // pred_check_branch
          %205 = sbr.rel (%p203) target = $region36
        $region35: #{tpu_custom_call.1} parent=27 // pred_region
          %206 = dma.done %s199, 2048
        $region36: #{tpu_custom_call.1} parent=27 // pred_fallthru
          _
        %s207 = sand.u32 %s51, 1
        %s208 = scalar_lea.sflag [#allocation5], %s207
        %s209 = sand.u32 %s51, 1
        %s210 = smul.addr %s209, 128
        %s211 = scalar_lea.vmem [#allocation4], %s210
        %p212 = pneg %p64
        %p213 = pneg %p61
        %s214 = sand.u32 %s77, 1
        %s215 = scalar_lea.sflag [#allocation8], %s214
        %s216 = sand.u32 %s77, 1
        %s217 = smul.addr %s216, 128
        %s218 = scalar_lea.vmem [#allocation7], %s217
        %p219 = pneg %p90
        %p220 = pneg %p87
        %p221 = pneg %p118
        %p222 = pneg %p115
        %s223 = sand.u32 %s105, 1
        %s224 = scalar_lea.sflag [#allocation6], %s223
        %s225 = sand.u32 %s105, 1
        %s226 = smul.addr %s225, 128
        %s227 = scalar_lea.vmem [#allocation9], %s226
        %s228 = sld [smem:[#allocation3 + %s32]]
        %s229 = smul.u32 16, %s31
        %s230 = smul.u32 16, %s31
        %v231 = vld [vmem:[%s193] sm:$0xff]
        %v232 = vld [vmem:[%s193 + $0x8] sm:$0xff]
        %v233 = vld [vmem:[%s193 + $0x10] sm:$0xff]
        %v234 = vld [vmem:[%s193 + $0x18] sm:$0xff]
        %v235 = vld [vmem:[%s193 + $0x20] sm:$0xff]
        %v236 = vld [vmem:[%s193 + $0x28] sm:$0xff]
        %v237 = vld [vmem:[%s193 + $0x30] sm:$0xff]
        %v238 = vld [vmem:[%s193 + $0x38] sm:$0xff]
        %v239 = vld [vmem:[%s193 + $0x40] sm:$0xff]
        %v240 = vld [vmem:[%s193 + $0x48] sm:$0xff]
        %v241 = vld [vmem:[%s193 + $0x50] sm:$0xff]
        %v242 = vld [vmem:[%s193 + $0x58] sm:$0xff]
        %v243 = vld [vmem:[%s193 + $0x60] sm:$0xff]
        %v244 = vld [vmem:[%s193 + $0x68] sm:$0xff]
        %v245 = vld [vmem:[%s193 + $0x70] sm:$0xff]
        %v246 = vld [vmem:[%s193 + $0x78] sm:$0xff]
        %v247 = vld [vmem:[%s202] sm:$0xff]
        %v248 = vld [vmem:[%s202 + $0x8] sm:$0xff]
        %v249 = vld [vmem:[%s202 + $0x10] sm:$0xff]
        %v250 = vld [vmem:[%s202 + $0x18] sm:$0xff]
        %v251 = vld [vmem:[%s202 + $0x20] sm:$0xff]
        %v252 = vld [vmem:[%s202 + $0x28] sm:$0xff]
        %v253 = vld [vmem:[%s202 + $0x30] sm:$0xff]
        %v254 = vld [vmem:[%s202 + $0x38] sm:$0xff]
        %v255 = vld [vmem:[%s202 + $0x40] sm:$0xff]
        %v256 = vld [vmem:[%s202 + $0x48] sm:$0xff]
        %v257 = vld [vmem:[%s202 + $0x50] sm:$0xff]
        %v258 = vld [vmem:[%s202 + $0x58] sm:$0xff]
        %v259 = vld [vmem:[%s202 + $0x60] sm:$0xff]
        %v260 = vld [vmem:[%s202 + $0x68] sm:$0xff]
        %v261 = vld [vmem:[%s202 + $0x70] sm:$0xff]
        %v262 = vld [vmem:[%s202 + $0x78] sm:$0xff]
        %263 = vmatprep.subr.mxu0 0.0
        %264 = vmatpush1.msra.mxu0 %v247
        %265 = vmatprep.subr.mxu0 0.0
        %266 = vmatpush1.msra.mxu0 %v248
        %267 = vmatprep.subr.mxu0 0.0
        %268 = vmatpush1.msra.mxu0 %v249
        %269 = vmatprep.subr.mxu0 0.0
        %270 = vmatpush1.msra.mxu0 %v250
        %271 = vmatprep.subr.mxu0 0.0
        %272 = vmatpush1.msra.mxu0 %v251
        %273 = vmatprep.subr.mxu0 0.0
        %274 = vmatpush1.msra.mxu0 %v252
        %275 = vmatprep.subr.mxu0 0.0
        %276 = vmatpush1.msra.mxu0 %v253
        %277 = vmatprep.subr.mxu0 0.0
        %278 = vmatpush1.msra.mxu0 %v254
        %279 = vmatprep.subr.mxu0 0.0
        %280 = vmatpush1.msra.mxu0 %v255
        %281 = vmatprep.subr.mxu0 0.0
        %282 = vmatpush1.msra.mxu0 %v256
        %283 = vmatprep.subr.mxu0 0.0
        %284 = vmatpush1.msra.mxu0 %v257
        %285 = vmatprep.subr.mxu0 0.0
        %286 = vmatpush1.msra.mxu0 %v258
        %287 = vmatprep.subr.mxu0 0.0
        %288 = vmatpush1.msra.mxu0 %v259
        %289 = vmatprep.subr.mxu0 0.0
        %290 = vmatpush1.msra.mxu0 %v260
        %291 = vmatprep.subr.mxu0 0.0
        %292 = vmatpush1.msra.mxu0 %v261
        %293 = vmatprep.subr.mxu0 0.0
        %294 = vmatpush1.msra.mxu0 %v262
        %295 = vmatprep.subr.mxu0 0.0
        %296 = vmatpush1.msra.mxu0 0.0
        %297 = vmatprep.subr.mxu0 0.0
        %298 = vmatpush1.msra.mxu0 0.0
        %299 = vmatprep.subr.mxu0 0.0
        %300 = vmatpush1.msra.mxu0 0.0
        %301 = vmatprep.subr.mxu0 0.0
        %302 = vmatpush1.msra.mxu0 0.0
        %303 = vmatprep.subr.mxu0 0.0
        %304 = vmatpush1.msra.mxu0 0.0
        %305 = vmatprep.subr.mxu0 0.0
        %306 = vmatpush1.msra.mxu0 0.0
        %307 = vmatprep.subr.mxu0 0.0
        %308 = vmatpush1.msra.mxu0 0.0
        %309 = vmatprep.subr.mxu0 0.0
        %310 = vmatpush1.msra.mxu0 0.0
        %311 = vmatprep.subr.mxu0 0.0
        %312 = vmatpush1.msra.mxu0 0.0
        %313 = vmatprep.subr.mxu0 0.0
        %314 = vmatpush1.msra.mxu0 0.0
        %315 = vmatprep.subr.mxu0 0.0
        %316 = vmatpush1.msra.mxu0 0.0
        %317 = vmatprep.subr.mxu0 0.0
        %318 = vmatpush1.msra.mxu0 0.0
        %319 = vmatprep.subr.mxu0 0.0
        %320 = vmatpush1.msra.mxu0 0.0
        %321 = vmatprep.subr.mxu0 0.0
        %322 = vmatpush1.msra.mxu0 0.0
        %323 = vmatprep.subr.mxu0 0.0
        %324 = vmatpush1.msra.mxu0 0.0
        %325 = vmatprep.subr.mxu0 0.0
        %326 = vmatpush1.msra.mxu0 0.0
        %327 = vmatprep.mubr.f32.mxu0 0.0
        %328 = vmatmul.mubr.f32.gmra.mrb[0].mxu0 %v231
        %v329 = vpop.f32.mrb[0].mxu0
        %v330 = vadd.f32 0.0, %v329
        %v331 = vpop.f32.mrb[0].mxu0
        %332 = vmatprep.mubr.f32.mxu0 0.0
        %333 = vmatmul.mubr.f32.gmra.mrb[0].mxu0 %v232
        %v334 = vpop.f32.mrb[0].mxu0
        %v335 = vadd.f32 0.0, %v334
        %v336 = vpop.f32.mrb[0].mxu0
        %337 = vmatprep.mubr.f32.mxu0 0.0
        %338 = vmatmul.mubr.f32.gmra.mrb[0].mxu0 %v233
        %v339 = vpop.f32.mrb[0].mxu0
        %v340 = vadd.f32 0.0, %v339
        %v341 = vpop.f32.mrb[0].mxu0
        %342 = vmatprep.mubr.f32.mxu0 0.0
        %343 = vmatmul.mubr.f32.gmra.mrb[0].mxu0 %v234
        %v344 = vpop.f32.mrb[0].mxu0
        %v345 = vadd.f32 0.0, %v344
        %v346 = vpop.f32.mrb[0].mxu0
        %347 = vmatprep.mubr.f32.mxu0 0.0
        %348 = vmatmul.mubr.f32.gmra.mrb[0].mxu0 %v235
        %v349 = vpop.f32.mrb[0].mxu0
        %v350 = vadd.f32 0.0, %v349
        %v351 = vpop.f32.mrb[0].mxu0
        %352 = vmatprep.mubr.f32.mxu0 0.0
        %353 = vmatmul.mubr.f32.gmra.mrb[0].mxu0 %v236
        %v354 = vpop.f32.mrb[0].mxu0
        %v355 = vadd.f32 0.0, %v354
        %v356 = vpop.f32.mrb[0].mxu0
        %357 = vmatprep.mubr.f32.mxu0 0.0
        %358 = vmatmul.mubr.f32.gmra.mrb[0].mxu0 %v237
        %v359 = vpop.f32.mrb[0].mxu0
        %v360 = vadd.f32 0.0, %v359
        %v361 = vpop.f32.mrb[0].mxu0
        %362 = vmatprep.mubr.f32.mxu0 0.0
        %363 = vmatmul.mubr.f32.gmra.mrb[0].mxu0 %v238
        %v364 = vpop.f32.mrb[0].mxu0
        %v365 = vadd.f32 0.0, %v364
        %v366 = vpop.f32.mrb[0].mxu0
        %367 = vmatprep.mubr.f32.mxu0 0.0
        %368 = vmatmul.mubr.f32.gmra.mrb[0].mxu0 %v239
        %v369 = vpop.f32.mrb[0].mxu0
        %v370 = vadd.f32 0.0, %v369
        %v371 = vpop.f32.mrb[0].mxu0
        %372 = vmatprep.mubr.f32.mxu0 0.0
        %373 = vmatmul.mubr.f32.gmra.mrb[0].mxu0 %v240
        %v374 = vpop.f32.mrb[0].mxu0
        %v375 = vadd.f32 0.0, %v374
        %v376 = vpop.f32.mrb[0].mxu0
        %377 = vmatprep.mubr.f32.mxu0 0.0
        %378 = vmatmul.mubr.f32.gmra.mrb[0].mxu0 %v241
        %v379 = vpop.f32.mrb[0].mxu0
        %v380 = vadd.f32 0.0, %v379
        %v381 = vpop.f32.mrb[0].mxu0
        %382 = vmatprep.mubr.f32.mxu0 0.0
        %383 = vmatmul.mubr.f32.gmra.mrb[0].mxu0 %v242
        %v384 = vpop.f32.mrb[0].mxu0
        %v385 = vadd.f32 0.0, %v384
        %v386 = vpop.f32.mrb[0].mxu0
        %387 = vmatprep.mubr.f32.mxu0 0.0
        %388 = vmatmul.mubr.f32.gmra.mrb[0].mxu0 %v243
        %v389 = vpop.f32.mrb[0].mxu0
        %v390 = vadd.f32 0.0, %v389
        %v391 = vpop.f32.mrb[0].mxu0
        %392 = vmatprep.mubr.f32.mxu0 0.0
        %393 = vmatmul.mubr.f32.gmra.mrb[0].mxu0 %v244
        %v394 = vpop.f32.mrb[0].mxu0
        %v395 = vadd.f32 0.0, %v394
        %v396 = vpop.f32.mrb[0].mxu0
        %397 = vmatprep.mubr.f32.mxu0 0.0
        %398 = vmatmul.mubr.f32.gmra.mrb[0].mxu0 %v245
        %v399 = vpop.f32.mrb[0].mxu0
        %v400 = vadd.f32 0.0, %v399
        %v401 = vpop.f32.mrb[0].mxu0
        %402 = vmatprep.mubr.f32.mxu0 0.0
        %403 = vmatmul.mubr.f32.gmra.mrb[0].mxu0 %v246
        %v404 = vpop.f32.mrb[0].mxu0
        %v405 = vadd.f32 0.0, %v404
        %v406 = vpop.f32.mrb[0].mxu0
        %407 = vdwg.mxu0
        %408 = vst [vmem:[%s227] sm:$0xff] %v330
        %409 = vst [vmem:[%s227 + $0x8] sm:$0xff] %v335
        %410 = vst [vmem:[%s227 + $0x10] sm:$0xff] %v340
        %411 = vst [vmem:[%s227 + $0x18] sm:$0xff] %v345
        %412 = vst [vmem:[%s227 + $0x20] sm:$0xff] %v350
        %413 = vst [vmem:[%s227 + $0x28] sm:$0xff] %v355
        %414 = vst [vmem:[%s227 + $0x30] sm:$0xff] %v360
        %415 = vst [vmem:[%s227 + $0x38] sm:$0xff] %v365
        %416 = vst [vmem:[%s227 + $0x40] sm:$0xff] %v370
        %417 = vst [vmem:[%s227 + $0x48] sm:$0xff] %v375
        %418 = vst [vmem:[%s227 + $0x50] sm:$0xff] %v380
        %419 = vst [vmem:[%s227 + $0x58] sm:$0xff] %v385
        %420 = vst [vmem:[%s227 + $0x60] sm:$0xff] %v390
        %421 = vst [vmem:[%s227 + $0x68] sm:$0xff] %v395
        %422 = vst [vmem:[%s227 + $0x70] sm:$0xff] %v400
        %423 = vst [vmem:[%s227 + $0x78] sm:$0xff] %v405
        %s424 = sand.u32 %s105, 1
        %s425 = scalar_lea.sflag [#allocation6], %s424
        %s426 = sand.u32 %s105, 1
        %s427 = smul.addr %s426, 128
        %s428 = scalar_lea.vmem [#allocation9], %s427
        // Predicated region
        $region37: #{tpu_custom_call.1} parent=27 // pred_check
          %p429 = pneg %p115
        $region38: #{tpu_custom_call.1} parent=27 // pred_check_branch
          %431 = sbr.rel (%p429) target = $region40
        $region39: #{tpu_custom_call.1} parent=27 // pred_region
          %s432 = smul.u32 16, %s31
          %s434 = ssub.s32 2048, 2048
          %435 = vsyncadd %s425, %s434
          %s436 = smul.addr %s32, 16
          %s437 = sadd.s32 %s432, %s436
          %s438 = smul.addr %s437, 128
          %s439 = scalar_lea.hbm %s3, %s438
          %s440 = sshll.u32 %s428, 4
          %s441 = int_to_ptr.vmem [resolvable:$true] %s440
          %446 = dma.vmem_to_hbm [thread:$0]  %s441, 2048, %s439, %s425, 128, 128, 8
        $region40: #{tpu_custom_call.1} parent=27 // pred_fallthru
          _
      $region28: #{tpu_custom_call.1} parent=5 // pred_fallthru
        _
      %p447 = scmp.le.s32.totalorder 2, %s22
      // Predicated region
      $region41: #{tpu_custom_call.1} parent=5 // pred_check
        %p448 = pneg %p447
      $region42: #{tpu_custom_call.1} parent=5 // pred_check_branch
        %450 = sbr.rel (%p448) target = $region44
      $region43: #{tpu_custom_call.1} parent=5 // pred_region
        %s451 = ssub.s32 %s22, 2
        // Predicated region
        $region45: #{tpu_custom_call.1} parent=43 // pred_check
          %p452 = pneg %p121
        $region46: #{tpu_custom_call.1} parent=43 // pred_check_branch
          %454 = sbr.rel (%p452) target = $region48
        $region47: #{tpu_custom_call.1} parent=43 // pred_region
          %s455 = sand.u32 %s106, 1
          %s456 = scalar_lea.sflag [#allocation6], %s455
          %s457 = sand.u32 %s106, 1
          %s458 = smul.addr %s457, 128
          %s459 = scalar_lea.vmem [#allocation9], %s458
          %460 = dma.done %s456, 2048
        $region48: #{tpu_custom_call.1} parent=43 // pred_fallthru
          _
      $region44: #{tpu_custom_call.1} parent=5 // pred_fallthru
        _
    $region6: #{tpu_custom_call.1} parent=1 // loop_footer
      %s26 = sadd.s32 1, %s22
    $region7: #{tpu_custom_call.1} parent=1 // loop_footer_branch
      %21 = sbr.rel target = $region3
    $region8: #{tpu_custom_call.1} parent=1 // loop_exit
      _
    %461 = vsyncpa [#allocation5], 1
    %s462 = scalar_lea.sflag [#allocation5], 1
    %463 = vsyncpa %s462, 1
    %464 = vsyncpa [#allocation8], 1
    %s465 = scalar_lea.sflag [#allocation8], 1
    %466 = vsyncpa %s465, 1
    %467 = vsyncpa [#allocation6], 1
    %s468 = scalar_lea.sflag [#allocation6], 1
    %469 = vsyncpa %s468, 1

</llo_original>
